<compile_context>
chip_gen: v5e
topology: v5e:2x2
jax: 0.10.0
libtpu: 0.0.40
codegen_flags: <defaults>
</compile_context>

<pallas_src>
import jax
import jax.numpy as jnp
from jax.experimental import pallas as pl
from jax.experimental.pallas import tpu as pltpu


def _round_up(x: int, m: int) -> int:
  return m * pl.cdiv(x, m)


def sentiment_cnn_kernel(lhs_ref, w_ref, mask_ref, fcw_ref, fcb_ref, out_ref,
                         pooled_ref):
  """One (batch-tile, L-chunk) step: fused conv + ReLU + mask + running max;
  FC + sigmoid on the last L-chunk."""
  l = pl.program_id(1)

  @pl.when(l == 0)
  def _init():
    # ReLU output is >= 0, so 0 is a neutral element for the running max.
    pooled_ref[...] = jnp.zeros_like(pooled_ref)

  TB, TL, K_pad = lhs_ref.shape
  N_pad = w_ref.shape[1]

  # Single lane-dense MXU matmul: im2col lhs (TB*TL, K_pad) x (K_pad, N_pad).
  # Conv bias is folded in via the constant-1.0 lhs column / bias row of w.
  lhs = lhs_ref[...].reshape(TB * TL, K_pad)
  conv = jnp.dot(lhs, w_ref[...], preferred_element_type=jnp.float32)
  # Post-matmul elementwise math stays f32 (no bf16 VPU on v5e).
  conv = jnp.maximum(conv, 0.0).reshape(TB, TL, N_pad) * mask_ref[...]
  pooled_ref[...] = jnp.maximum(pooled_ref[...], jnp.max(conv, axis=1))

  @pl.when(l == pl.num_programs(1) - 1)
  def _finalize():
    # TODO(synk): dropout applied as identity (eval-mode semantics).
    # FC (n*F -> 1) as a VPU multiply + lane reduce; padded columns weight 0.
    logits = jnp.sum(pooled_ref[...] * fcw_ref[...], axis=1) + fcb_ref[0, 0]
    # Lane-dense (1, TB)-wide store (one XLU transpose) instead of width-1 vst.
    out_ref[0, 0, :] = jax.nn.sigmoid(logits)


def sentiment_cnn_forward(token_ids, params, filter_sizes, *,
                          block_b=128, block_l=128,
                          vmem_limit_bytes=64 * 1024 * 1024):
  """Full forward: embedding gather + im2col in JAX glue, rest in one kernel.

  block_b / block_l / vmem_limit_bytes are the per-generation tuning knobs:
  raise block_b and vmem_limit_bytes on v5e/v6e (128 MiB VMEM), keep the
  defaults (or smaller) on v7x (64 MiB VMEM, 2 TensorCores -> even batch grid).
  """
  filter_sizes = tuple(int(f) for f in filter_sizes)
  n = len(filter_sizes)
  fs_max, fs_min = max(filter_sizes), min(filter_sizes)
  B, S = token_ids.shape
  E = params["embedding"].shape[1]
  F = params["conv_w"][0].shape[-1]
  assert S >= fs_max, "sequence shorter than the largest filter"

  N = n * F
  N_pad = _round_up(N, 128)                 # lane-dense fused output axis
  K = fs_max * E                            # fused contraction depth
  K_pad = _round_up(K + 1, 128)             # +1 column of ones folds conv bias

  # bf16 sublane tile is 16 rows -> 16-align TB and TL so every reshape /
  # window merge stays layout preserving.
  L_valid = S - fs_min + 1
  TL = _round_up(min(block_l, L_valid), 16)
  L_pad = _round_up(L_valid, TL)
  S_pad = L_pad + fs_max - 1

  n_b_tiles = pl.cdiv(B, block_b)           # minimize batch padding
  TB = _round_up(pl.cdiv(B, n_b_tiles), 16)
  B_pad = _round_up(B, TB)
  grid = (B_pad // TB, L_pad // TL)

  # ---- Glue: embedding gather + im2col (lane-dense, bf16). ------------------
  # TODO(synk): for very large B*S move the gather/im2col into the kernel via
  # PrefetchScalarGridSpec (token_ids as scalar prefetch) so embedding rows
  # stream HBM->VMEM once instead of round-tripping the im2col tensor via HBM.
  emb_table = params["embedding"].astype(jnp.bfloat16)
  embedded = emb_table[token_ids]                                  # (B, S, E)
  embedded = jnp.pad(embedded, ((0, B_pad - B), (0, S_pad - S), (0, 0)))
  lhs = jnp.concatenate(
      [embedded[:, r:r + L_pad, :] for r in range(fs_max)], axis=-1)
  lhs = jnp.pad(lhs, ((0, 0), (0, 0), (0, K_pad - K)))
  lhs = lhs.at[:, :, K].set(1.0)            # constant-1 column for the bias row

  # ---- Pack conv weights (+bias row), position mask and FC weights. ---------
  w_packed = jnp.zeros((K_pad, N_pad), jnp.float32)
  mask = jnp.zeros((L_pad, N_pad), jnp.float32)
  fc_w_row = jnp.zeros((1, N_pad), jnp.float32)
  pos = jnp.arange(L_pad, dtype=jnp.int32)[:, None]
  for i, fs in enumerate(filter_sizes):
    c0, c1 = i * F, (i + 1) * F
    w_packed = w_packed.at[:fs * E, c0:c1].set(
        params["conv_w"][i].reshape(fs * E, F))
    w_packed = w_packed.at[K, c0:c1].set(params["conv_b"][i])      # folded bias
    valid = (pos < (S - fs + 1)).astype(jnp.float32)               # (L_pad, 1)
    mask = mask.at[:, c0:c1].set(jnp.broadcast_to(valid, (L_pad, F)))
  fc_w_row = fc_w_row.at[0, :N].set(params["fc_w"][:, 0])
  fc_b = params["fc_b"].reshape(1, 1).astype(jnp.float32)
  w_packed = w_packed.astype(jnp.bfloat16)

  cost = pl.CostEstimate(
      flops=2 * B_pad * L_pad * K_pad * N_pad + 4 * B_pad * L_pad * N_pad,
      transcendentals=B_pad,
      bytes_accessed=(lhs.size * 2 + w_packed.size * 2 + mask.size * 4
                      + fc_w_row.size * 4 + B_pad * 4))

  out = pl.pallas_call(
      sentiment_cnn_kernel,
      out_shape=jax.ShapeDtypeStruct((B_pad // TB, 1, TB), jnp.float32),
      grid=grid,
      in_specs=[
          # Activations: tiled over batch and L-chunk -> double-buffered DMA.
          pl.BlockSpec((TB, TL, K_pad), lambda b, l: (b, l, 0)),
          # Fused conv weights: constant index -> single-buffered VMEM resident.
          pl.BlockSpec((K_pad, N_pad), lambda b, l: (0, 0),
                       pipeline_mode=pl.Buffered(1)),
          # Per-chunk position/column validity mask.
          pl.BlockSpec((TL, N_pad), lambda b, l: (l, 0)),
          # FC weights: constant index -> single-buffered.
          pl.BlockSpec((1, N_pad), lambda b, l: (0, 0),
                       pipeline_mode=pl.Buffered(1)),
          # FC bias: scalar in SMEM.
          pl.BlockSpec(memory_space=pltpu.MemorySpace.SMEM),
      ],
      out_specs=pl.BlockSpec((1, 1, TB), lambda b, l: (b, 0, 0)),
      scratch_shapes=[pltpu.VMEM((TB, N_pad), jnp.float32)],
      compiler_params=pltpu.CompilerParams(
          dimension_semantics=("parallel", "arbitrary"),
          vmem_limit_bytes=vmem_limit_bytes),
      cost_estimate=cost,
  )(lhs, w_packed, mask, fc_w_row, fc_b)
  return out.reshape(B_pad, 1)[:B]


def reference_forward(token_ids, params, filter_sizes):
  """Pure-JAX f32 reference mirroring the PyTorch forward (eval mode)."""
  emb = params["embedding"][token_ids].astype(jnp.float32)        # (B, S, E)
  pooled = []
  for idx, fs in enumerate(filter_sizes):
    w = params["conv_w"][idx]                                     # (fs, E, F)
    b = params["conv_b"][idx]                                     # (F,)
    L = emb.shape[1] - fs + 1
    conv = sum(
        jnp.einsum("ble,ef->blf", emb[:, r:r + L, :], w[r]) for r in range(fs)
    ) + b
    conv = jax.nn.relu(conv)
    pooled.append(jnp.max(conv, axis=1))
  cat = jnp.concatenate(pooled, axis=1)
  return jax.nn.sigmoid(cat @ params["fc_w"] + params["fc_b"])


def init_params(key, vocab_size, embed_dim, num_filters, filter_sizes):
  keys = jax.random.split(key, 3 + 2 * len(filter_sizes))
  emb = 0.1 * jax.random.normal(keys[0], (vocab_size, embed_dim), jnp.float32)
  emb = emb.at[1].set(0.0)  # padding_idx=1 row zeroed (as nn.Embedding init)
  conv_w, conv_b = [], []
  for i, fs in enumerate(filter_sizes):
    # PyTorch conv weight is (F, 1, fs, E); stored as (fs, E, F) for the kernel.
    w = 0.1 * jax.random.normal(
        keys[1 + 2 * i], (fs, embed_dim, num_filters), jnp.float32)
    b = 0.1 * jax.random.normal(
        keys[2 + 2 * i], (num_filters,), jnp.float32)
    conv_w.append(w)
    conv_b.append(b)
  total_f = len(filter_sizes) * num_filters
  # PyTorch Linear weight is (1, total_f); stored transposed as (total_f, 1).
  fc_w = 0.1 * jax.random.normal(keys[-2], (total_f, 1), jnp.float32)
  fc_b = 0.1 * jax.random.normal(keys[-1], (1,), jnp.float32)
  return {
      "embedding": emb,
      "conv_w": conv_w,
      "conv_b": conv_b,
      "fc_w": fc_w,
      "fc_b": fc_b,
  }


if __name__ == "__main__":
  vocab_size = 50
  embed_dim = 16
  num_filters = 8
  filter_sizes = (2, 3, 4)
  batch = 32
  seq_len = 12

  key = jax.random.PRNGKey(0)
  k_tok, k_params = jax.random.split(key)
  params = init_params(k_params, vocab_size, embed_dim, num_filters,
                       filter_sizes)
  token_ids = jax.random.randint(k_tok, (batch, seq_len), 0, vocab_size,
                                 dtype=jnp.int32)
  # Sprinkle in some padding tokens (padding_idx=1).
  token_ids = token_ids.at[0, -2:].set(1)

  # block_b=16 -> TB=16, grid=(2, 1): exercises the batch-tiled "parallel"
  # pipeline with an even step count (v7x 2-TC friendly).
  out = sentiment_cnn_forward(token_ids, params, filter_sizes, block_b=16)
  out = jax.block_until_ready(out)

  ref = reference_forward(token_ids, params, filter_sizes)
  assert out.shape == (batch, 1)
  # bf16 matmul inputs vs f32 reference -> loose-but-safe tolerance.
  assert jnp.allclose(out, ref, atol=2e-2, rtol=0.0), (out, ref)

  print("KERNEL_OK")
</pallas_src>

<mosaic_0001>
module attributes {stable_mosaic.version = 11 : i64} {
  func.func @sentiment_cnn_kernel(%arg0: i32, %arg1: i32, %arg2: memref<16x16x128xbf16, #tpu.memory_space<vmem>>, %arg3: memref<128x128xbf16, #tpu.memory_space<vmem>>, %arg4: memref<16x128xf32, #tpu.memory_space<vmem>>, %arg5: memref<1x128xf32, #tpu.memory_space<vmem>>, %arg6: memref<1x1xf32, #tpu.memory_space<smem>>, %arg7: memref<1x1x16xf32, #tpu.memory_space<vmem>>, %arg8: memref<16x128xf32, #tpu.memory_space<vmem>>) attributes {dimension_semantics = [#tpu.dimension_semantics<parallel>, #tpu.dimension_semantics<arbitrary>], iteration_bounds = array<i64: 2, 1>, scalar_prefetch = 0 : i64, scratch_operands = 1 : i64, tpu.core_type = #tpu.core_type<tc>, window_params = [{transform_indices = @transform_0, window_bounds = array<i64: 16, 16, 128>}, {pipeline_mode = #tpu.pipeline_mode<synchronous>, transform_indices = @transform_1, window_bounds = array<i64: 128, 128>}, {transform_indices = @transform_2, window_bounds = array<i64: 16, 128>}, {pipeline_mode = #tpu.pipeline_mode<synchronous>, transform_indices = @transform_3, window_bounds = array<i64: 1, 128>}, {transform_indices = @transform_4, window_bounds = array<i64: 1, 1>}, {transform_indices = @transform_5, window_bounds = array<i64: 1, 1, 16>}]} {
    %c0_i32 = arith.constant 0 : i32
    %0 = arith.cmpi eq, %arg1, %c0_i32 : i32
    %1 = arith.extui %0 : i1 to i32
    %c0_i32_0 = arith.constant 0 : i32
    %2 = arith.cmpi ne, %1, %c0_i32_0 : i32
    scf.if %2 {
      %cst_15 = arith.constant 0.000000e+00 : f32
      %21 = vector.broadcast %cst_15 : f32 to vector<16x128xf32>
      %c0_16 = arith.constant 0 : index
      %c0_17 = arith.constant 0 : index
      %22 = vector.load %arg8[%c0_16, %c0_17] : memref<16x128xf32, #tpu.memory_space<vmem>>, vector<16x128xf32>
      tpu.vector_store %arg8[%c0_16, %c0_17], %21 {strides = array<i32>} : memref<16x128xf32, #tpu.memory_space<vmem>>, vector<16x128xf32>,
    } else {
    }
    %c0 = arith.constant 0 : index
    %c0_1 = arith.constant 0 : index
    %c0_2 = arith.constant 0 : index
    %3 = vector.load %arg2[%c0, %c0_1, %c0_2] : memref<16x16x128xbf16, #tpu.memory_space<vmem>>, vector<16x16x128xbf16>
    %4 = vector.shape_cast %3 : vector<16x16x128xbf16> to vector<256x128xbf16>
    %c0_3 = arith.constant 0 : index
    %c0_4 = arith.constant 0 : index
    %5 = vector.load %arg3[%c0_3, %c0_4] : memref<128x128xbf16, #tpu.memory_space<vmem>>, vector<128x128xbf16>
    %cst = arith.constant dense<0.000000e+00> : vector<256x128xf32>
    %6 = tpu.matmul %4, %5, %cst {dimension_numbers = #tpu.dot_dimension_numbers<[1], [0], [0], [1], [0, 0, 1, 1], [], []>} : vector<256x128xbf16>, vector<128x128xbf16>, vector<256x128xf32> -> vector<256x128xf32>
    %cst_5 = arith.constant 0.000000e+00 : f32
    %7 = vector.broadcast %cst_5 : f32 to vector<256x128xf32>
    %8 = arith.maximumf %6, %7 : vector<256x128xf32>
    %9 = vector.shape_cast %8 : vector<256x128xf32> to vector<16x16x128xf32>
    %c0_6 = arith.constant 0 : index
    %c0_7 = arith.constant 0 : index
    %10 = vector.load %arg4[%c0_6, %c0_7] : memref<16x128xf32, #tpu.memory_space<vmem>>, vector<16x128xf32>
    %11 = vector.shape_cast %10 : vector<16x128xf32> to vector<1x16x128xf32>
    %12 = vector.broadcast %11 : vector<1x16x128xf32> to vector<16x16x128xf32>
    %13 = arith.mulf %9, %12 : vector<16x16x128xf32>
    %c0_8 = arith.constant 0 : index
    %c0_9 = arith.constant 0 : index
    %14 = vector.load %arg8[%c0_8, %c0_9] : memref<16x128xf32, #tpu.memory_space<vmem>>, vector<16x128xf32>
    %cst_10 = arith.constant dense<0xFF800000> : vector<16x128xf32>
    %15 = vector.multi_reduction <maximumf>, %13, %cst_10 [1] : vector<16x16x128xf32> to vector<16x128xf32>
    %16 = arith.maximumf %14, %15 : vector<16x128xf32>
    %c0_11 = arith.constant 0 : index
    %c0_12 = arith.constant 0 : index
    %17 = vector.load %arg8[%c0_11, %c0_12] : memref<16x128xf32, #tpu.memory_space<vmem>>, vector<16x128xf32>
    tpu.vector_store %arg8[%c0_11, %c0_12], %16 {strides = array<i32>} : memref<16x128xf32, #tpu.memory_space<vmem>>, vector<16x128xf32>,
    %c0_i32_13 = arith.constant 0 : i32
    %18 = arith.cmpi eq, %arg1, %c0_i32_13 : i32
    %19 = arith.extui %18 : i1 to i32
    %c0_i32_14 = arith.constant 0 : i32
    %20 = arith.cmpi ne, %19, %c0_i32_14 : i32
    scf.if %20 {
      %c0_15 = arith.constant 0 : index
      %c0_16 = arith.constant 0 : index
      %21 = vector.load %arg8[%c0_15, %c0_16] : memref<16x128xf32, #tpu.memory_space<vmem>>, vector<16x128xf32>
      %c0_17 = arith.constant 0 : index
      %c0_18 = arith.constant 0 : index
      %22 = vector.load %arg5[%c0_17, %c0_18] : memref<1x128xf32, #tpu.memory_space<vmem>>, vector<1x128xf32>
      %23 = vector.broadcast %22 : vector<1x128xf32> to vector<16x128xf32>
      %24 = arith.mulf %21, %23 : vector<16x128xf32>
      %cst_19 = arith.constant dense<0.000000e+00> : vector<16xf32>
      %25 = vector.multi_reduction <add>, %24, %cst_19 [1] : vector<16x128xf32> to vector<16xf32>
      %c0_20 = arith.constant 0 : index
      %c0_21 = arith.constant 0 : index
      %26 = memref.load %arg6[%c0_20, %c0_21] : memref<1x1xf32, #tpu.memory_space<smem>>
      %27 = vector.broadcast %26 : f32 to vector<16xf32>
      %28 = arith.addf %25, %27 : vector<16xf32>
      %29 = arith.negf %28 : vector<16xf32>
      %30 = math.exp %29 : vector<16xf32>
      %cst_22 = arith.constant 1.000000e+00 : f32
      %31 = vector.broadcast %cst_22 : f32 to vector<16xf32>
      %32 = arith.addf %31, %30 : vector<16xf32>
      %33 = arith.divf %31, %32 : vector<16xf32>
      %c0_23 = arith.constant 0 : index
      %c0_24 = arith.constant 0 : index
      %c0_25 = arith.constant 0 : index
      %34 = vector.load %arg7[%c0_23, %c0_24, %c0_25] : memref<1x1x16xf32, #tpu.memory_space<vmem>>, vector<1x1x16xf32>
      %35 = vector.shape_cast %34 : vector<1x1x16xf32> to vector<16xf32>
      %36 = vector.shape_cast %33 : vector<16xf32> to vector<1x1x16xf32>
      tpu.vector_store %arg7[%c0_23, %c0_24, %c0_25], %36 {strides = array<i32>} : memref<1x1x16xf32, #tpu.memory_space<vmem>>, vector<1x1x16xf32>,
    } else {
    }
    return
  }
  func.func @transform_0(%arg0: i32, %arg1: i32) -> (i32, i32, i32) {
    %c0_i32 = arith.constant 0 : i32
    %c0_i32_0 = arith.constant 0 : i32
    return %arg0, %arg1, %c0_i32 : i32, i32, i32
  }
  func.func @transform_1(%arg0: i32, %arg1: i32) -> (i32, i32) {
    %c0_i32 = arith.constant 0 : i32
    %c0_i32_0 = arith.constant 0 : i32
    %c0_i32_1 = arith.constant 0 : i32
    return %c0_i32, %c0_i32_0 : i32, i32
  }
  func.func @transform_2(%arg0: i32, %arg1: i32) -> (i32, i32) {
    %c0_i32 = arith.constant 0 : i32
    %c0_i32_0 = arith.constant 0 : i32
    return %arg1, %c0_i32 : i32, i32
  }
  func.func @transform_3(%arg0: i32, %arg1: i32) -> (i32, i32) {
    %c0_i32 = arith.constant 0 : i32
    %c0_i32_0 = arith.constant 0 : i32
    %c0_i32_1 = arith.constant 0 : i32
    return %c0_i32, %c0_i32_0 : i32, i32
  }
  func.func @transform_4(%arg0: i32, %arg1: i32) -> (i32, i32) {
    %c0_i32 = arith.constant 0 : i32
    %c0_i32_0 = arith.constant 0 : i32
    %c0_i32_1 = arith.constant 0 : i32
    return %c0_i32, %c0_i32_0 : i32, i32
  }
  func.func @transform_5(%arg0: i32, %arg1: i32) -> (i32, i32, i32) {
    %c0_i32 = arith.constant 0 : i32
    %c0_i32_0 = arith.constant 0 : i32
    %c0_i32_1 = arith.constant 0 : i32
    return %arg0, %c0_i32, %c0_i32_0 : i32, i32, i32
  }
}

</mosaic_0001>

<llo_original>
// kernel: tpu_custom_call.1
$region0: #{tpu_custom_call.1}
  #allocation0 [shape = 'u32[]', space=smem, size = 0x4, offset = 0x4, fixed_abs, tag = 'smem constant byte address 0x4 - core index']
  #allocation1 [shape = 'u32[72,128]{1,0:T(1,128)}', space=vmem, size = 0x9000, scoped, tag = 'internal scratch']
  #allocation2 [shape = 'f32[16,128]{1,0:T(8,128)}', space=vmem, size = 0x2000, scoped, tag = 'scratch operand']
  #allocation3 [shape = 'f32[1,1]{1,0:T(1,128)S(6)}', space=smem, size = 0x200, scoped, tag = 'scoped memory for tpu_custom_call.1']
  %s0 = inlined_call_operand.hbm [shape: bf16[32,16,128], index: 0, kind: input, shape index: {}]
  %s1 = inlined_call_operand.hbm [shape: bf16[128,128], index: 1, kind: input, shape index: {}]
  %s2 = inlined_call_operand.hbm [shape: f32[16,128], index: 2, kind: input, shape index: {}]
  %s3 = inlined_call_operand.vmem [shape: f32[1,128], index: 3, kind: input, shape index: {}]
  %s4 = inlined_call_operand.<no memory space> [shape: f32[1,1], index: 4, kind: input, shape index: {}]
  %s5 = inlined_call_operand.hbm [shape: f32[2,1,16], index: 5, kind: output, shape index: {}]
  %s6 = sld [smem:[#allocation0]]
  $region73: #{tpu_custom_call.1} parent=0
    _
  %s8 = ssub.s32 1, %s6
  %s9 = scalar_select 0, %s8, %s6
  %10 = sst [smem:[#allocation3]] %s4
  $region1: #{tpu_custom_call.1} parent=0
    #allocation4 [shape = 'u8[131072]{0}', space=vmem, size = 0x20000, scoped, tag = 'input window, operand 0']
    #allocation5 [shape = 's32[2]{0}', space=sflag, size = 0x8, scoped, tag = 'scoped memory for tpu_custom_call.1']
    #allocation6 [shape = 's32[2]{0}', space=sflag, size = 0x8, scoped, tag = 'scoped memory for tpu_custom_call.1']
    #allocation7 [shape = 'u8[32768]{0}', space=vmem, size = 0x8000, scoped, tag = 'input window, operand 1, single buffered']
    #allocation8 [shape = 's32[1]{0}', space=sflag, size = 0x4, scoped, tag = 'scoped memory for tpu_custom_call.1']
    #allocation9 [shape = 'u8[8192]{0}', space=vmem, size = 0x2000, scoped, tag = 'input window, operand 2, single buffered']
    #allocation10 [shape = 'u8[1024]{0}', space=vmem, size = 0x400, scoped, tag = 'output window, operand 0']
    %11 = vsyncpa [#allocation5], 0
    %s12 = scalar_lea.sflag [#allocation5], 1
    %13 = vsyncpa %s12, 0
    %14 = vsyncpa [#allocation8], 0
    %15 = vsyncpa [#allocation6], 0
    %s16 = scalar_lea.sflag [#allocation6], 1
    %17 = vsyncpa %s16, 0
    loop: start=0, step=1, limit=4
    $region2: #{tpu_custom_call.1} parent=1 // loop_pre_header
      _
    $region3: #{tpu_custom_call.1} parent=1 // loop_header
      %s19 = sphi 0, %s23
      %p20 = scmp.ge.s32.totalorder %s19, 4
      %s26 = sphi 0, %s38
      %s27 = sphi 0, %s34
      %s28 = sphi 0, %s26
      %s29 = sphi 0, %s27
      %s30 = sphi 0, %s28
      %s31 = sphi 0, %s29
      %s43 = sphi 0, %s45
      %s46 = sphi 0, %s43
      %s47 = sphi 0, %s46
      %s63 = sphi 0, %s47
      %s67 = sphi 0, %s67
      %s69 = sphi 0, %s67
      %s70 = sphi 0, %s69
      %s84 = sphi 0, %s70
      %s90 = sphi 0, %s92
      %s93 = sphi 0, %s90
      %s94 = sphi 0, %s93
      %s110 = sphi 0, %s94
      %s114 = sphi 0, %s114
      %s116 = sphi 0, %s114
      %s117 = sphi 0, %s116
      %s131 = sphi 0, %s117
      %s135 = sphi 0, %s135
      %s137 = sphi 0, %s135
      %s138 = sphi 0, %s137
      %s152 = sphi 0, %s138
      %s158 = sphi 0, %s160
      %s161 = sphi 0, %s158
      %s162 = sphi 0, %s161
      %s178 = sphi 0, %s162
    $region4: #{tpu_custom_call.1} parent=1 // loop_header_branch
      %22 = sbr.rel (%p20) target = $region8
    $region5: #{tpu_custom_call.1} parent=1 // loop_body
      %s24 = ssub.s32 %s19, 1
      %s25 = ssub.s32 %s19, 2
      %s32 = sadd.s32 1, %s27
      %p33 = scmp.ge.s32.totalorder %s32, 1
      %s34 = scalar_select %p33, 0, %s32
      %s35 = sadd.s32 1, %s26
      %s36 = scalar_select %p33, %s35, %s26
      %p37 = scmp.ge.s32.totalorder %s36, 2
      %s38 = scalar_select %p37, 0, %s36
      %s39 = ssub.s32 %s26, %s38
      %s40 = ssub.s32 %s27, %s34
      %s41 = sor.u32 %s39, %s40
      %p42 = scmp.eq.s32.totalorder %s41, 0
      %s44 = sadd.s32 %s43, 1
      %s45 = scalar_select %p42, %s43, %s44
      %p48 = pneg %p42
      %p49 = scmp.eq.s32.totalorder %s19, 1
      %p50 = por %p48, %p49
      %p51 = scmp.ne.s32.totalorder %s43, %s46
      %p52 = scmp.eq.s32.totalorder %s19, 0
      %p53 = por %p51, %p52
      %p54 = scmp.ne.s32.totalorder %s43, %s46
      %p55 = scmp.eq.s32.totalorder %s24, 1
      %p56 = por %p54, %p55
      %p57 = scmp.ne.s32.totalorder %s46, %s47
      %p58 = scmp.eq.s32.totalorder %s24, 0
      %p59 = por %p57, %p58
      %p60 = scmp.ne.s32.totalorder %s46, %s47
      %p61 = scmp.eq.s32.totalorder %s25, 1
      %p62 = por %p60, %p61
      %p64 = scmp.ne.s32.totalorder %s47, %s63
      %p65 = scmp.eq.s32.totalorder %s25, 0
      %p66 = por %p64, %p65
      %s68 = sadd.s32 %s67, 1
      %p71 = scmp.eq.s32.totalorder %s19, 1
      %p72 = scmp.ne.s32.totalorder %s67, %s69
      %p73 = scmp.eq.s32.totalorder %s19, 0
      %p74 = por %p72, %p73
      %p75 = scmp.ne.s32.totalorder %s67, %s69
      %p76 = scmp.eq.s32.totalorder %s24, 1
      %p77 = por %p75, %p76
      %p78 = scmp.ne.s32.totalorder %s69, %s70
      %p79 = scmp.eq.s32.totalorder %s24, 0
      %p80 = por %p78, %p79
      %p81 = scmp.ne.s32.totalorder %s69, %s70
      %p82 = scmp.eq.s32.totalorder %s25, 1
      %p83 = por %p81, %p82
      %p85 = scmp.ne.s32.totalorder %s70, %s84
      %p86 = scmp.eq.s32.totalorder %s25, 0
      %p87 = por %p85, %p86
      %s88 = ssub.s32 %s27, %s34
      %p89 = scmp.eq.s32.totalorder %s88, 0
      %s91 = sadd.s32 %s90, 1
      %s92 = scalar_select %p89, %s90, %s91
      %p95 = pneg %p89
      %p96 = scmp.eq.s32.totalorder %s19, 1
      %p97 = por %p95, %p96
      %p98 = scmp.ne.s32.totalorder %s90, %s93
      %p99 = scmp.eq.s32.totalorder %s19, 0
      %p100 = por %p98, %p99
      %p101 = scmp.ne.s32.totalorder %s90, %s93
      %p102 = scmp.eq.s32.totalorder %s24, 1
      %p103 = por %p101, %p102
      %p104 = scmp.ne.s32.totalorder %s93, %s94
      %p105 = scmp.eq.s32.totalorder %s24, 0
      %p106 = por %p104, %p105
      %p107 = scmp.ne.s32.totalorder %s93, %s94
      %p108 = scmp.eq.s32.totalorder %s25, 1
      %p109 = por %p107, %p108
      %p111 = scmp.ne.s32.totalorder %s94, %s110
      %p112 = scmp.eq.s32.totalorder %s25, 0
      %p113 = por %p111, %p112
      %s115 = sadd.s32 %s114, 1
      %p118 = scmp.eq.s32.totalorder %s19, 1
      %p119 = scmp.ne.s32.totalorder %s114, %s116
      %p120 = scmp.eq.s32.totalorder %s19, 0
      %p121 = por %p119, %p120
      %p122 = scmp.ne.s32.totalorder %s114, %s116
      %p123 = scmp.eq.s32.totalorder %s24, 1
      %p124 = por %p122, %p123
      %p125 = scmp.ne.s32.totalorder %s116, %s117
      %p126 = scmp.eq.s32.totalorder %s24, 0
      %p127 = por %p125, %p126
      %p128 = scmp.ne.s32.totalorder %s116, %s117
      %p129 = scmp.eq.s32.totalorder %s25, 1
      %p130 = por %p128, %p129
      %p132 = scmp.ne.s32.totalorder %s117, %s131
      %p133 = scmp.eq.s32.totalorder %s25, 0
      %p134 = por %p132, %p133
      %s136 = sadd.s32 %s135, 1
      %p139 = scmp.eq.s32.totalorder %s19, 1
      %p140 = scmp.ne.s32.totalorder %s135, %s137
      %p141 = scmp.eq.s32.totalorder %s19, 0
      %p142 = por %p140, %p141
      %p143 = scmp.ne.s32.totalorder %s135, %s137
      %p144 = scmp.eq.s32.totalorder %s24, 1
      %p145 = por %p143, %p144
      %p146 = scmp.ne.s32.totalorder %s137, %s138
      %p147 = scmp.eq.s32.totalorder %s24, 0
      %p148 = por %p146, %p147
      %p149 = scmp.ne.s32.totalorder %s137, %s138
      %p150 = scmp.eq.s32.totalorder %s25, 1
      %p151 = por %p149, %p150
      %p153 = scmp.ne.s32.totalorder %s138, %s152
      %p154 = scmp.eq.s32.totalorder %s25, 0
      %p155 = por %p153, %p154
      %s156 = ssub.s32 %s26, %s38
      %p157 = scmp.eq.s32.totalorder %s156, 0
      %s159 = sadd.s32 %s158, 1
      %s160 = scalar_select %p157, %s158, %s159
      %p163 = pneg %p157
      %p164 = scmp.eq.s32.totalorder %s19, 1
      %p165 = por %p163, %p164
      %p166 = scmp.ne.s32.totalorder %s158, %s161
      %p167 = scmp.eq.s32.totalorder %s19, 0
      %p168 = por %p166, %p167
      %p169 = scmp.ne.s32.totalorder %s158, %s161
      %p170 = scmp.eq.s32.totalorder %s24, 1
      %p171 = por %p169, %p170
      %p172 = scmp.ne.s32.totalorder %s161, %s162
      %p173 = scmp.eq.s32.totalorder %s24, 0
      %p174 = por %p172, %p173
      %p175 = scmp.ne.s32.totalorder %s161, %s162
      %p176 = scmp.eq.s32.totalorder %s25, 1
      %p177 = por %p175, %p176
      %p179 = scmp.ne.s32.totalorder %s162, %s178
      %p180 = scmp.eq.s32.totalorder %s25, 0
      %p181 = por %p179, %p180
      %p182 = scmp.le.s32.totalorder 1, %s19
      %p183 = scmp.lt.s32.totalorder %s19, 3
      %p184 = pnand %p182, %p183
      %p185 = pneg %p184
      // Predicated region
      $region9: #{tpu_custom_call.1} parent=5 // pred_check
        _
      $region10: #{tpu_custom_call.1} parent=5 // pred_check_branch
        %187 = sbr.rel (%p184) target = $region12
      $region11: #{tpu_custom_call.1} parent=5 // pred_region
        %s188 = ssub.s32 %s19, 1
        // Predicated region
        $region13: #{tpu_custom_call.1} parent=11 // pred_check
          %p189 = pneg %p80
        $region14: #{tpu_custom_call.1} parent=11 // pred_check_branch
          %191 = sbr.rel (%p189) target = $region16
        $region15: #{tpu_custom_call.1} parent=11 // pred_region
          %193 = vsyncadd [#allocation8], 0
          %s194 = sshll.u32 %s1, 4
          %s195 = int_to_ptr.hbm [resolvable:$true] %s194
          %s196 = sshll.u32 [#allocation7], 4
          %s197 = int_to_ptr.vmem [resolvable:$true] %s196
          %202 = dma.hbm_to_vmem [thread:$0]  %s195, 1024, %s197, [#allocation8], 64, 64, 4
        $region16: #{tpu_custom_call.1} parent=11 // pred_fallthru
          _
        // Predicated region
        $region17: #{tpu_custom_call.1} parent=11 // pred_check
          %p203 = pneg %p106
        $region18: #{tpu_custom_call.1} parent=11 // pred_check_branch
          %205 = sbr.rel (%p203) target = $region20
        $region19: #{tpu_custom_call.1} parent=11 // pred_region
          %s206 = smul.u32 2, %s29
          %208 = vsyncadd [#allocation8], 0
          %s209 = smul.addr %s206, 8
          %s210 = scalar_lea.hbm %s2, %s209
          %s211 = sshll.u32 %s210, 4
          %s212 = int_to_ptr.hbm [resolvable:$true] %s211
          %s213 = sshll.u32 [#allocation9], 4
          %s214 = int_to_ptr.vmem [resolvable:$true] %s213
          %219 = dma.hbm_to_vmem [thread:$0]  %s212, 256, %s214, [#allocation8], 128, 128, 8
        $region20: #{tpu_custom_call.1} parent=11 // pred_fallthru
          _
        // Predicated region
        $region21: #{tpu_custom_call.1} parent=11 // pred_check
          %p220 = pneg %p127
        $region22: #{tpu_custom_call.1} parent=11 // pred_check_branch
          %222 = sbr.rel (%p220) target = $region24
        $region23: #{tpu_custom_call.1} parent=11 // pred_region
          _
        $region24: #{tpu_custom_call.1} parent=11 // pred_fallthru
          _
        // Predicated region
        $region25: #{tpu_custom_call.1} parent=11 // pred_check
          %p223 = pneg %p148
        $region26: #{tpu_custom_call.1} parent=11 // pred_check_branch
          %225 = sbr.rel (%p223) target = $region28
        $region27: #{tpu_custom_call.1} parent=11 // pred_region
          _
        $region28: #{tpu_custom_call.1} parent=11 // pred_fallthru
          _
      $region12: #{tpu_custom_call.1} parent=5 // pred_fallthru
        _
      %p226 = scmp.lt.s32.totalorder %s19, 2
      // Predicated region
      $region29: #{tpu_custom_call.1} parent=5 // pred_check
        %p227 = pneg %p226
      $region30: #{tpu_custom_call.1} parent=5 // pred_check_branch
        %229 = sbr.rel (%p227) target = $region32
      $region31: #{tpu_custom_call.1} parent=5 // pred_region
        // Predicated region
        $region33: #{tpu_custom_call.1} parent=31 // pred_check
          %p230 = pneg %p53
        $region34: #{tpu_custom_call.1} parent=31 // pred_check_branch
          %232 = sbr.rel (%p230) target = $region36
        $region35: #{tpu_custom_call.1} parent=31 // pred_region
          %s233 = sand.u32 %s43, 1
          %s234 = scalar_lea.sflag [#allocation5], %s233
          %s235 = sand.u32 %s43, 1
          %s236 = smul.addr %s235, 128
          %s237 = scalar_lea.vmem [#allocation4], %s236
          %s238 = smul.u32 16, %s26
          %s239 = smul.u32 2, %s27
          %241 = vsyncadd %s234, 0
          %s242 = smul.addr %s238, 2
          %s243 = sadd.s32 %s239, %s242
          %s244 = smul.addr %s243, 4
          %s245 = scalar_lea.hbm %s0, %s244
          %s246 = sshll.u32 %s245, 4
          %s247 = int_to_ptr.hbm [resolvable:$true] %s246
          %s248 = sshll.u32 %s237, 4
          %s249 = int_to_ptr.vmem [resolvable:$true] %s248
          %254 = dma.hbm_to_vmem [thread:$0]  %s247, 2048, %s249, %s234, 64, 64, 4
        $region36: #{tpu_custom_call.1} parent=31 // pred_fallthru
          _
      $region32: #{tpu_custom_call.1} parent=5 // pred_fallthru
        _
      %p255 = scmp.le.s32.totalorder 1, %s19
      %p256 = scmp.lt.s32.totalorder %s19, 3
      %p257 = pnand %p255, %p256
      %p258 = pneg %p257
      // Predicated region
      $region37: #{tpu_custom_call.1} parent=5 // pred_check
        _
      $region38: #{tpu_custom_call.1} parent=5 // pred_check_branch
        %260 = sbr.rel (%p257) target = $region40
      $region39: #{tpu_custom_call.1} parent=5 // pred_region
        %s261 = ssub.s32 %s19, 1
        %s262 = sand.u32 %s46, 1
        %s263 = scalar_lea.sflag [#allocation5], %s262
        %s264 = sand.u32 %s46, 1
        %s265 = smul.addr %s264, 128
        %s266 = scalar_lea.vmem [#allocation4], %s265
        // Predicated region
        $region41: #{tpu_custom_call.1} parent=39 // pred_check
          %p267 = pneg %p59
        $region42: #{tpu_custom_call.1} parent=39 // pred_check_branch
          %269 = sbr.rel (%p267) target = $region44
        $region43: #{tpu_custom_call.1} parent=39 // pred_region
          %271 = dma.done %s263, 2048
        $region44: #{tpu_custom_call.1} parent=39 // pred_fallthru
          _
        // Predicated region
        $region45: #{tpu_custom_call.1} parent=39 // pred_check
          %p272 = pneg %p80
        $region46: #{tpu_custom_call.1} parent=39 // pred_check_branch
          %274 = sbr.rel (%p272) target = $region48
        $region47: #{tpu_custom_call.1} parent=39 // pred_region
          %276 = dma.done [#allocation8], 1024
        $region48: #{tpu_custom_call.1} parent=39 // pred_fallthru
          _
        // Predicated region
        $region49: #{tpu_custom_call.1} parent=39 // pred_check
          %p277 = pneg %p106
        $region50: #{tpu_custom_call.1} parent=39 // pred_check_branch
          %279 = sbr.rel (%p277) target = $region52
        $region51: #{tpu_custom_call.1} parent=39 // pred_region
          %281 = dma.done [#allocation8], 256
        $region52: #{tpu_custom_call.1} parent=39 // pred_fallthru
          _
        %s282 = sand.u32 %s46, 1
        %s283 = scalar_lea.sflag [#allocation5], %s282
        %s284 = sand.u32 %s46, 1
        %s285 = smul.addr %s284, 128
        %s286 = scalar_lea.vmem [#allocation4], %s285
        %p287 = pneg %p59
        %p288 = pneg %p56
        %p289 = pneg %p80
        %p290 = pneg %p77
        %p291 = pneg %p106
        %p292 = pneg %p103
        %p293 = pneg %p127
        %p294 = pneg %p124
        %p295 = pneg %p148
        %p296 = pneg %p145
        %p297 = pneg %p174
        %p298 = pneg %p171
        %s299 = sand.u32 %s161, 1
        %s300 = scalar_lea.sflag [#allocation6], %s299
        %s301 = sand.u32 %s161, 1
        %s302 = scalar_lea.vmem [#allocation10], %s301
        %s303 = smul.u32 16, %s28
        %s304 = smul.u32 2, %s29
        %s305 = smul.u32 2, %s29
        %p306 = scmp.eq.s32.totalorder %s29, 0
        // Predicated region
        $region53: #{tpu_custom_call.1} parent=39 // pred_check
          %p307 = pneg %p306
        $region54: #{tpu_custom_call.1} parent=39 // pred_check_branch
          %309 = sbr.rel (%p307) target = $region56
        $region55: #{tpu_custom_call.1} parent=39 // pred_region
          %310 = vst [vmem:[#allocation2] sm:$0xff] 0.0
          %311 = vst [vmem:[#allocation2 + $0x8] sm:$0xff] 0.0
        $region56: #{tpu_custom_call.1} parent=39 // pred_fallthru
          _
        %v312 = vld [vmem:[%s266] sm:$0xf]
        %v313 = vld [vmem:[%s266 + $0x4] sm:$0xf]
        %v314 = vld [vmem:[%s266 + $0x8] sm:$0xf]
        %v315 = vld [vmem:[%s266 + $0xc] sm:$0xf]
        %v316 = vld [vmem:[%s266 + $0x10] sm:$0xf]
        %v317 = vld [vmem:[%s266 + $0x14] sm:$0xf]
        %v318 = vld [vmem:[%s266 + $0x18] sm:$0xf]
        %v319 = vld [vmem:[%s266 + $0x1c] sm:$0xf]
        %v320 = vld [vmem:[%s266 + $0x20] sm:$0xf]
        %v321 = vld [vmem:[%s266 + $0x24] sm:$0xf]
        %v322 = vld [vmem:[%s266 + $0x28] sm:$0xf]
        %v323 = vld [vmem:[%s266 + $0x2c] sm:$0xf]
        %v324 = vld [vmem:[%s266 + $0x30] sm:$0xf]
        %v325 = vld [vmem:[%s266 + $0x34] sm:$0xf]
        %v326 = vld [vmem:[%s266 + $0x38] sm:$0xf]
        %v327 = vld [vmem:[%s266 + $0x3c] sm:$0xf]
        %v328 = vld [vmem:[%s266 + $0x40] sm:$0xf]
        %v329 = vld [vmem:[%s266 + $0x44] sm:$0xf]
        %v330 = vld [vmem:[%s266 + $0x48] sm:$0xf]
        %v331 = vld [vmem:[%s266 + $0x4c] sm:$0xf]
        %v332 = vld [vmem:[%s266 + $0x50] sm:$0xf]
        %v333 = vld [vmem:[%s266 + $0x54] sm:$0xf]
        %v334 = vld [vmem:[%s266 + $0x58] sm:$0xf]
        %v335 = vld [vmem:[%s266 + $0x5c] sm:$0xf]
        %v336 = vld [vmem:[%s266 + $0x60] sm:$0xf]
        %v337 = vld [vmem:[%s266 + $0x64] sm:$0xf]
        %v338 = vld [vmem:[%s266 + $0x68] sm:$0xf]
        %v339 = vld [vmem:[%s266 + $0x6c] sm:$0xf]
        %v340 = vld [vmem:[%s266 + $0x70] sm:$0xf]
        %v341 = vld [vmem:[%s266 + $0x74] sm:$0xf]
        %v342 = vld [vmem:[%s266 + $0x78] sm:$0xf]
        %v343 = vld [vmem:[%s266 + $0x7c] sm:$0xf]
        %v344 = vld [vmem:[#allocation7] sm:$0xf]
        %v345 = vld [vmem:[#allocation7 + $0x4] sm:$0xf]
        %v346 = vld [vmem:[#allocation7 + $0x8] sm:$0xf]
        %v347 = vld [vmem:[#allocation7 + $0xc] sm:$0xf]
        %v348 = vld [vmem:[#allocation7 + $0x10] sm:$0xf]
        %v349 = vld [vmem:[#allocation7 + $0x14] sm:$0xf]
        %v350 = vld [vmem:[#allocation7 + $0x18] sm:$0xf]
        %v351 = vld [vmem:[#allocation7 + $0x1c] sm:$0xf]
        %v352 = vld [vmem:[#allocation7 + $0x20] sm:$0xf]
        %v353 = vld [vmem:[#allocation7 + $0x24] sm:$0xf]
        %v354 = vld [vmem:[#allocation7 + $0x28] sm:$0xf]
        %v355 = vld [vmem:[#allocation7 + $0x2c] sm:$0xf]
        %v356 = vld [vmem:[#allocation7 + $0x30] sm:$0xf]
        %v357 = vld [vmem:[#allocation7 + $0x34] sm:$0xf]
        %v358 = vld [vmem:[#allocation7 + $0x38] sm:$0xf]
        %v359 = vld [vmem:[#allocation7 + $0x3c] sm:$0xf]
        %v392 = vunpack.c.l.b16 %v312
        %v393 = vunpack.c.l.b16 %v313
        %v394 = vunpack.c.l.b16 %v314
        %v395 = vunpack.c.l.b16 %v315
        %v396 = vunpack.c.l.b16 %v316
        %v397 = vunpack.c.l.b16 %v317
        %v398 = vunpack.c.l.b16 %v318
        %v399 = vunpack.c.l.b16 %v319
        %v400 = vunpack.c.l.b16 %v320
        %v401 = vunpack.c.l.b16 %v321
        %v402 = vunpack.c.l.b16 %v322
        %v403 = vunpack.c.l.b16 %v323
        %v404 = vunpack.c.l.b16 %v324
        %v405 = vunpack.c.l.b16 %v325
        %v406 = vunpack.c.l.b16 %v326
        %v407 = vunpack.c.l.b16 %v327
        %v408 = vunpack.c.l.b16 %v328
        %v409 = vunpack.c.l.b16 %v329
        %v410 = vunpack.c.l.b16 %v330
        %v411 = vunpack.c.l.b16 %v331
        %v412 = vunpack.c.l.b16 %v332
        %v413 = vunpack.c.l.b16 %v333
        %v414 = vunpack.c.l.b16 %v334
        %v415 = vunpack.c.l.b16 %v335
        %v416 = vunpack.c.l.b16 %v336
        %v417 = vunpack.c.l.b16 %v337
        %v418 = vunpack.c.l.b16 %v338
        %v419 = vunpack.c.l.b16 %v339
        %v420 = vunpack.c.l.b16 %v340
        %v421 = vunpack.c.l.b16 %v341
        %v422 = vunpack.c.l.b16 %v342
        %v423 = vunpack.c.l.b16 %v343
        %v424 = vpack.c.b16 %v393, %v392
        %v425 = vpack.c.b16 %v395, %v394
        %v426 = vpack.c.b16 %v397, %v396
        %v427 = vpack.c.b16 %v399, %v398
        %v428 = vpack.c.b16 %v401, %v400
        %v429 = vpack.c.b16 %v403, %v402
        %v430 = vpack.c.b16 %v405, %v404
        %v431 = vpack.c.b16 %v407, %v406
        %v432 = vpack.c.b16 %v409, %v408
        %v433 = vpack.c.b16 %v411, %v410
        %v434 = vpack.c.b16 %v413, %v412
        %v435 = vpack.c.b16 %v415, %v414
        %v436 = vpack.c.b16 %v417, %v416
        %v437 = vpack.c.b16 %v419, %v418
        %v438 = vpack.c.b16 %v421, %v420
        %v439 = vpack.c.b16 %v423, %v422
        %v472 = vunpack.c.l.b16 %v344
        %v473 = vunpack.c.l.b16 %v345
        %v474 = vunpack.c.l.b16 %v346
        %v475 = vunpack.c.l.b16 %v347
        %v476 = vunpack.c.l.b16 %v348
        %v477 = vunpack.c.l.b16 %v349
        %v478 = vunpack.c.l.b16 %v350
        %v479 = vunpack.c.l.b16 %v351
        %v480 = vunpack.c.l.b16 %v352
        %v481 = vunpack.c.l.b16 %v353
        %v482 = vunpack.c.l.b16 %v354
        %v483 = vunpack.c.l.b16 %v355
        %v484 = vunpack.c.l.b16 %v356
        %v485 = vunpack.c.l.b16 %v357
        %v486 = vunpack.c.l.b16 %v358
        %v487 = vunpack.c.l.b16 %v359
        %v488 = vpack.c.b16 %v473, %v472
        %v489 = vpack.c.b16 %v475, %v474
        %v490 = vpack.c.b16 %v477, %v476
        %v491 = vpack.c.b16 %v479, %v478
        %v492 = vpack.c.b16 %v481, %v480
        %v493 = vpack.c.b16 %v483, %v482
        %v494 = vpack.c.b16 %v485, %v484
        %v495 = vpack.c.b16 %v487, %v486
        %504 = vmatpush.bf16.msra.mxu0 %v495
        %505 = vmatpush.bf16.msra.mxu0 %v494
        %506 = vmatpush.bf16.msra.mxu0 %v493
        %507 = vmatpush.bf16.msra.mxu0 %v492
        %508 = vmatpush.bf16.msra.mxu0 %v491
        %509 = vmatpush.bf16.msra.mxu0 %v490
        %510 = vmatpush.bf16.msra.mxu0 %v489
        %511 = vmatpush.bf16.msra.mxu0 %v488
        %512 = vmatmul.bf16.gmra.mxu0 %v424
        %v513 = vpop.f32.mrf.mxu0
        %v514 = vadd.f32 0.0, %v513
        %v515 = vpop.f32.mrf.mxu0
        %v516 = vadd.f32 0.0, %v515
        %517 = vmatmul.bf16.gmra.mxu0 %v425
        %v518 = vpop.f32.mrf.mxu0
        %v519 = vadd.f32 0.0, %v518
        %v520 = vpop.f32.mrf.mxu0
        %v521 = vadd.f32 0.0, %v520
        %522 = vmatmul.bf16.gmra.mxu0 %v426
        %v523 = vpop.f32.mrf.mxu0
        %v524 = vadd.f32 0.0, %v523
        %v525 = vpop.f32.mrf.mxu0
        %v526 = vadd.f32 0.0, %v525
        %527 = vmatmul.bf16.gmra.mxu0 %v427
        %v528 = vpop.f32.mrf.mxu0
        %v529 = vadd.f32 0.0, %v528
        %v530 = vpop.f32.mrf.mxu0
        %v531 = vadd.f32 0.0, %v530
        %532 = vmatmul.bf16.gmra.mxu0 %v428
        %v533 = vpop.f32.mrf.mxu0
        %v534 = vadd.f32 0.0, %v533
        %v535 = vpop.f32.mrf.mxu0
        %v536 = vadd.f32 0.0, %v535
        %537 = vmatmul.bf16.gmra.mxu0 %v429
        %v538 = vpop.f32.mrf.mxu0
        %v539 = vadd.f32 0.0, %v538
        %v540 = vpop.f32.mrf.mxu0
        %v541 = vadd.f32 0.0, %v540
        %542 = vmatmul.bf16.gmra.mxu0 %v430
        %v543 = vpop.f32.mrf.mxu0
        %v544 = vadd.f32 0.0, %v543
        %v545 = vpop.f32.mrf.mxu0
        %v546 = vadd.f32 0.0, %v545
        %547 = vmatmul.bf16.gmra.mxu0 %v431
        %v548 = vpop.f32.mrf.mxu0
        %v549 = vadd.f32 0.0, %v548
        %v550 = vpop.f32.mrf.mxu0
        %v551 = vadd.f32 0.0, %v550
        %552 = vmatmul.bf16.gmra.mxu0 %v432
        %v553 = vpop.f32.mrf.mxu0
        %v554 = vadd.f32 0.0, %v553
        %v555 = vpop.f32.mrf.mxu0
        %v556 = vadd.f32 0.0, %v555
        %557 = vmatmul.bf16.gmra.mxu0 %v433
        %v558 = vpop.f32.mrf.mxu0
        %v559 = vadd.f32 0.0, %v558
        %v560 = vpop.f32.mrf.mxu0
        %v561 = vadd.f32 0.0, %v560
        %562 = vmatmul.bf16.gmra.mxu0 %v434
        %v563 = vpop.f32.mrf.mxu0
        %v564 = vadd.f32 0.0, %v563
        %v565 = vpop.f32.mrf.mxu0
        %v566 = vadd.f32 0.0, %v565
        %567 = vmatmul.bf16.gmra.mxu0 %v435
        %v568 = vpop.f32.mrf.mxu0
        %v569 = vadd.f32 0.0, %v568
        %v570 = vpop.f32.mrf.mxu0
        %v571 = vadd.f32 0.0, %v570
        %572 = vmatmul.bf16.gmra.mxu0 %v436
        %v573 = vpop.f32.mrf.mxu0
        %v574 = vadd.f32 0.0, %v573
        %v575 = vpop.f32.mrf.mxu0
        %v576 = vadd.f32 0.0, %v575
        %577 = vmatmul.bf16.gmra.mxu0 %v437
        %v578 = vpop.f32.mrf.mxu0
        %v579 = vadd.f32 0.0, %v578
        %v580 = vpop.f32.mrf.mxu0
        %v581 = vadd.f32 0.0, %v580
        %582 = vmatmul.bf16.gmra.mxu0 %v438
        %v583 = vpop.f32.mrf.mxu0
        %v584 = vadd.f32 0.0, %v583
        %v585 = vpop.f32.mrf.mxu0
        %v586 = vadd.f32 0.0, %v585
        %587 = vmatmul.bf16.gmra.mxu0 %v439
        %v588 = vpop.f32.mrf.mxu0
        %v589 = vadd.f32 0.0, %v588
        %v590 = vpop.f32.mrf.mxu0
        %v591 = vadd.f32 0.0, %v590
        %592 = vdwg.mxu0
        %v593 = vmax.f32 %v514, 0.0
        %v594 = vmax.f32 %v516, 0.0
        %v595 = vmax.f32 %v519, 0.0
        %v596 = vmax.f32 %v521, 0.0
        %v597 = vmax.f32 %v524, 0.0
        %v598 = vmax.f32 %v526, 0.0
        %v599 = vmax.f32 %v529, 0.0
        %v600 = vmax.f32 %v531, 0.0
        %v601 = vmax.f32 %v534, 0.0
        %v602 = vmax.f32 %v536, 0.0
        %v603 = vmax.f32 %v539, 0.0
        %v604 = vmax.f32 %v541, 0.0
        %v605 = vmax.f32 %v544, 0.0
        %v606 = vmax.f32 %v546, 0.0
        %v607 = vmax.f32 %v549, 0.0
        %v608 = vmax.f32 %v551, 0.0
        %v609 = vmax.f32 %v554, 0.0
        %v610 = vmax.f32 %v556, 0.0
        %v611 = vmax.f32 %v559, 0.0
        %v612 = vmax.f32 %v561, 0.0
        %v613 = vmax.f32 %v564, 0.0
        %v614 = vmax.f32 %v566, 0.0
        %v615 = vmax.f32 %v569, 0.0
        %v616 = vmax.f32 %v571, 0.0
        %v617 = vmax.f32 %v574, 0.0
        %v618 = vmax.f32 %v576, 0.0
        %v619 = vmax.f32 %v579, 0.0
        %v620 = vmax.f32 %v581, 0.0
        %v621 = vmax.f32 %v584, 0.0
        %v622 = vmax.f32 %v586, 0.0
        %v623 = vmax.f32 %v589, 0.0
        %v624 = vmax.f32 %v591, 0.0
        %v625 = vld [vmem:[#allocation9] sm:$0xff]
        %v626 = vld [vmem:[#allocation9 + $0x8] sm:$0xff]
        %v627 = vmul.f32 %v593, %v625
        %v628 = vmul.f32 %v594, %v626
        %v629 = vmul.f32 %v595, %v625
        %v630 = vmul.f32 %v596, %v626
        %v631 = vmul.f32 %v597, %v625
        %v632 = vmul.f32 %v598, %v626
        %v633 = vmul.f32 %v599, %v625
        %v634 = vmul.f32 %v600, %v626
        %v635 = vmul.f32 %v601, %v625
        %v636 = vmul.f32 %v602, %v626
        %v637 = vmul.f32 %v603, %v625
        %v638 = vmul.f32 %v604, %v626
        %v639 = vmul.f32 %v605, %v625
        %v640 = vmul.f32 %v606, %v626
        %v641 = vmul.f32 %v607, %v625
        %v642 = vmul.f32 %v608, %v626
        %v643 = vmul.f32 %v609, %v625
        %v644 = vmul.f32 %v610, %v626
        %v645 = vmul.f32 %v611, %v625
        %v646 = vmul.f32 %v612, %v626
        %v647 = vmul.f32 %v613, %v625
        %v648 = vmul.f32 %v614, %v626
        %v649 = vmul.f32 %v615, %v625
        %v650 = vmul.f32 %v616, %v626
        %v651 = vmul.f32 %v617, %v625
        %v652 = vmul.f32 %v618, %v626
        %v653 = vmul.f32 %v619, %v625
        %v654 = vmul.f32 %v620, %v626
        %v655 = vmul.f32 %v621, %v625
        %v656 = vmul.f32 %v622, %v626
        %v657 = vmul.f32 %v623, %v625
        %v658 = vmul.f32 %v624, %v626
        %v659 = vld [vmem:[#allocation2] sm:$0xff]
        %v660 = vld [vmem:[#allocation2 + $0x8] sm:$0xff]
        %v661 = vmax.f32 %v627, %v628
        %v662 = vrot.slane %v661, 4
        %v663 = vmax.f32 %v661, %v662
        %v664 = vrot.slane %v663, 2
        %v665 = vmax.f32 %v663, %v664
        %v666 = vrot.slane %v665, 1
        %v667 = vmax.f32 %v665, %v666
        %v668 = vmax.f32 %v629, %v630
        %v669 = vrot.slane %v668, 4
        %v670 = vmax.f32 %v668, %v669
        %v671 = vrot.slane %v670, 2
        %v672 = vmax.f32 %v670, %v671
        %v673 = vrot.slane %v672, 1
        %v674 = vmax.f32 %v672, %v673
        %v675 = vmax.f32 %v631, %v632
        %v676 = vrot.slane %v675, 4
        %v677 = vmax.f32 %v675, %v676
        %v678 = vrot.slane %v677, 2
        %v679 = vmax.f32 %v677, %v678
        %v680 = vrot.slane %v679, 1
        %v681 = vmax.f32 %v679, %v680
        %v682 = vmax.f32 %v633, %v634
        %v683 = vrot.slane %v682, 4
        %v684 = vmax.f32 %v682, %v683
        %v685 = vrot.slane %v684, 2
        %v686 = vmax.f32 %v684, %v685
        %v687 = vrot.slane %v686, 1
        %v688 = vmax.f32 %v686, %v687
        %v689 = vmax.f32 %v635, %v636
        %v690 = vrot.slane %v689, 4
        %v691 = vmax.f32 %v689, %v690
        %v692 = vrot.slane %v691, 2
        %v693 = vmax.f32 %v691, %v692
        %v694 = vrot.slane %v693, 1
        %v695 = vmax.f32 %v693, %v694
        %v696 = vmax.f32 %v637, %v638
        %v697 = vrot.slane %v696, 4
        %v698 = vmax.f32 %v696, %v697
        %v699 = vrot.slane %v698, 2
        %v700 = vmax.f32 %v698, %v699
        %v701 = vrot.slane %v700, 1
        %v702 = vmax.f32 %v700, %v701
        %v703 = vmax.f32 %v639, %v640
        %v704 = vrot.slane %v703, 4
        %v705 = vmax.f32 %v703, %v704
        %v706 = vrot.slane %v705, 2
        %v707 = vmax.f32 %v705, %v706
        %v708 = vrot.slane %v707, 1
        %v709 = vmax.f32 %v707, %v708
        %v710 = vmax.f32 %v641, %v642
        %v711 = vrot.slane %v710, 4
        %v712 = vmax.f32 %v710, %v711
        %v713 = vrot.slane %v712, 2
        %v714 = vmax.f32 %v712, %v713
        %v715 = vrot.slane %v714, 1
        %v716 = vmax.f32 %v714, %v715
        %v717 = vmax.f32 %v643, %v644
        %v718 = vrot.slane %v717, 4
        %v719 = vmax.f32 %v717, %v718
        %v720 = vrot.slane %v719, 2
        %v721 = vmax.f32 %v719, %v720
        %v722 = vrot.slane %v721, 1
        %v723 = vmax.f32 %v721, %v722
        %v724 = vmax.f32 %v645, %v646
        %v725 = vrot.slane %v724, 4
        %v726 = vmax.f32 %v724, %v725
        %v727 = vrot.slane %v726, 2
        %v728 = vmax.f32 %v726, %v727
        %v729 = vrot.slane %v728, 1
        %v730 = vmax.f32 %v728, %v729
        %v731 = vmax.f32 %v647, %v648
        %v732 = vrot.slane %v731, 4
        %v733 = vmax.f32 %v731, %v732
        %v734 = vrot.slane %v733, 2
        %v735 = vmax.f32 %v733, %v734
        %v736 = vrot.slane %v735, 1
        %v737 = vmax.f32 %v735, %v736
        %v738 = vmax.f32 %v649, %v650
        %v739 = vrot.slane %v738, 4
        %v740 = vmax.f32 %v738, %v739
        %v741 = vrot.slane %v740, 2
        %v742 = vmax.f32 %v740, %v741
        %v743 = vrot.slane %v742, 1
        %v744 = vmax.f32 %v742, %v743
        %v745 = vmax.f32 %v651, %v652
        %v746 = vrot.slane %v745, 4
        %v747 = vmax.f32 %v745, %v746
        %v748 = vrot.slane %v747, 2
        %v749 = vmax.f32 %v747, %v748
        %v750 = vrot.slane %v749, 1
        %v751 = vmax.f32 %v749, %v750
        %v752 = vmax.f32 %v653, %v654
        %v753 = vrot.slane %v752, 4
        %v754 = vmax.f32 %v752, %v753
        %v755 = vrot.slane %v754, 2
        %v756 = vmax.f32 %v754, %v755
        %v757 = vrot.slane %v756, 1
        %v758 = vmax.f32 %v756, %v757
        %v759 = vmax.f32 %v655, %v656
        %v760 = vrot.slane %v759, 4
        %v761 = vmax.f32 %v759, %v760
        %v762 = vrot.slane %v761, 2
        %v763 = vmax.f32 %v761, %v762
        %v764 = vrot.slane %v763, 1
        %v765 = vmax.f32 %v763, %v764
        %v766 = vmax.f32 %v657, %v658
        %v767 = vrot.slane %v766, 4
        %v768 = vmax.f32 %v766, %v767
        %v769 = vrot.slane %v768, 2
        %v770 = vmax.f32 %v768, %v769
        %v771 = vrot.slane %v770, 1
        %v772 = vmax.f32 %v770, %v771
        %vm789 = vcmask 1041409
        %v790 = vsel %vm789, %v674, %v667
        %vm791 = vcmask 1042434
        %v792 = vsel %vm791, %v681, %v790
        %vm793 = vcmask 1043459
        %v794 = vsel %vm793, %v688, %v792
        %vm795 = vcmask 1044484
        %v796 = vsel %vm795, %v695, %v794
        %vm797 = vcmask 1045509
        %v798 = vsel %vm797, %v702, %v796
        %vm799 = vcmask 1046534
        %v800 = vsel %vm799, %v709, %v798
        %vm801 = vcmask 1047559
        %v802 = vsel %vm801, %v716, %v800
        %v803 = vsel %vm789, %v730, %v723
        %v804 = vsel %vm791, %v737, %v803
        %v805 = vsel %vm793, %v744, %v804
        %v806 = vsel %vm795, %v751, %v805
        %v807 = vsel %vm797, %v758, %v806
        %v808 = vsel %vm799, %v765, %v807
        %v809 = vsel %vm801, %v772, %v808
        %v812 = vmax.f32 %v659, %v802
        %v813 = vmax.f32 %v660, %v809
        %814 = vst [vmem:[#allocation2] sm:$0xff] %v812
        %815 = vst [vmem:[#allocation2 + $0x8] sm:$0xff] %v813
        // Predicated region
        $region57: #{tpu_custom_call.1} parent=39 // pred_check
          %p816 = pneg %p306
        $region58: #{tpu_custom_call.1} parent=39 // pred_check_branch
          %818 = sbr.rel (%p816) target = $region60
        $region59: #{tpu_custom_call.1} parent=39 // pred_region
          %v819 = vld [vmem:[#allocation2] sm:$0xff]
          %v820 = vld [vmem:[#allocation2 + $0x8] sm:$0xff]
          %v821 = vld [vmem:[%s3] sm:$0x1]
          %v823 = vperm.slane %v821, 0
          %v825 = vmul.f32 %v819, %v823
          %v826 = vmul.f32 %v820, %v823
          %827 = vadd.xlane.f32.xlu0 %v825
          %v828 = vpop.xlane.xlu0 %827
          %829 = vadd.xlane.f32.xlu0 %v826
          %v830 = vpop.xlane.xlu0 %829
          %s831 = sld [smem:[#allocation3]]
          %v832 = vstv %s831
          %v833 = vadd.f32 %v828, %v832
          %v834 = vadd.f32 %v830, %v832
          %v835 = vxor.u32 %v833, 2147483648
          %v836 = vxor.u32 %v834, 2147483648
          %v837 = vmul.f32 %v835, 1.442695
          %v838 = vpow.pop %v837
          %v839 = vmul.f32 %v836, 1.442695
          %v840 = vpow.pop %v839
          %v841 = vadd.f32 %v838, 1.0
          %v842 = vadd.f32 %v840, 1.0
          %v843 = vrcp.pop %v841
          %v844 = vmul.f32 %v841, %v843
          %v845 = vsub.f32 1.0, %v844
          %v846 = vmul.f32 %v843, %v845
          %v847 = vadd.f32 %v843, %v846
          %vm848 = vweird.f32 %v841
          %vm849 = vweird.f32 %v843
          %vm850 = vmor %vm848, %vm849
          %v851 = vsel %vm850, %v843, %v847
          %v852 = vand.u32 2147483647, %v841
          %vm853 = vcmp.eq.f32.partialorder %v852, 8.507059e+37
          %v854 = vand.u32 %v841, 2147483648
          %v855 = vor.u32 1.1754944e-38, %v854
          %v856 = vsel %vm853, %v855, %v851
          %v857 = vmul.f32 1.0, %v856
          %v858 = vrcp.pop %v842
          %v859 = vmul.f32 %v842, %v858
          %v860 = vsub.f32 1.0, %v859
          %v861 = vmul.f32 %v858, %v860
          %v862 = vadd.f32 %v858, %v861
          %vm863 = vweird.f32 %v842
          %vm864 = vweird.f32 %v858
          %vm865 = vmor %vm863, %vm864
          %v866 = vsel %vm865, %v858, %v862
          %v867 = vand.u32 2147483647, %v842
          %vm868 = vcmp.eq.f32.partialorder %v867, 8.507059e+37
          %v869 = vand.u32 %v842, 2147483648
          %v870 = vor.u32 1.1754944e-38, %v869
          %v871 = vsel %vm868, %v870, %v866
          %v872 = vmul.f32 1.0, %v871
          %v875 = vlaneseq
          %v876 = vand.u32 %v875, 127
          %v877 = vperm.slane %v857, %v876
          %v878 = vadd.s32 %v876, 4294967288
          %v879 = vperm.slane %v872, %v878
          %vm880 = vcmask 130112
          %v881 = vsel %vm880, %v879, %v877
          %vm883 = vcmask 122880
          %884 = vst.msk [vmem:[%s302] sm:$0x1] %vm883, %v881
        $region60: #{tpu_custom_call.1} parent=39 // pred_fallthru
          _
        %s885 = sand.u32 %s161, 1
        %s886 = scalar_lea.sflag [#allocation6], %s885
        %s887 = sand.u32 %s161, 1
        %s888 = scalar_lea.vmem [#allocation10], %s887
        // Predicated region
        $region61: #{tpu_custom_call.1} parent=39 // pred_check
          %p889 = pneg %p171
        $region62: #{tpu_custom_call.1} parent=39 // pred_check_branch
          %891 = sbr.rel (%p889) target = $region64
        $region63: #{tpu_custom_call.1} parent=39 // pred_region
          %893 = vsyncadd %s886, 0
          %s894 = scalar_lea.hbm %s5, %s28
          %s896 = sshll.u32 %s888, 4
          %s897 = int_to_ptr.vmem [resolvable:$true] %s896
          %s898 = sshll.u32 %s894, 4
          %s899 = int_to_ptr.hbm [resolvable:$true] %s898
          %901 = dma.vmem_to_hbm [thread:$0]  %s897, 16, %s899, %s886
        $region64: #{tpu_custom_call.1} parent=39 // pred_fallthru
          _
      $region40: #{tpu_custom_call.1} parent=5 // pred_fallthru
        _
      %p902 = scmp.le.s32.totalorder 2, %s19
      // Predicated region
      $region65: #{tpu_custom_call.1} parent=5 // pred_check
        %p903 = pneg %p902
      $region66: #{tpu_custom_call.1} parent=5 // pred_check_branch
        %905 = sbr.rel (%p903) target = $region68
      $region67: #{tpu_custom_call.1} parent=5 // pred_region
        %s906 = ssub.s32 %s19, 2
        // Predicated region
        $region69: #{tpu_custom_call.1} parent=67 // pred_check
          %p907 = pneg %p177
        $region70: #{tpu_custom_call.1} parent=67 // pred_check_branch
          %909 = sbr.rel (%p907) target = $region72
        $region71: #{tpu_custom_call.1} parent=67 // pred_region
          %s910 = sand.u32 %s162, 1
          %s911 = scalar_lea.sflag [#allocation6], %s910
          %s912 = sand.u32 %s162, 1
          %s913 = scalar_lea.vmem [#allocation10], %s912
          %915 = dma.done %s911, 16
        $region72: #{tpu_custom_call.1} parent=67 // pred_fallthru
          _
      $region68: #{tpu_custom_call.1} parent=5 // pred_fallthru
        _
    $region6: #{tpu_custom_call.1} parent=1 // loop_footer
      %s23 = sadd.s32 1, %s19
    $region7: #{tpu_custom_call.1} parent=1 // loop_footer_branch
      %18 = sbr.rel target = $region3
    $region8: #{tpu_custom_call.1} parent=1 // loop_exit
      _
    %916 = vsyncpa [#allocation5], 1
    %s917 = scalar_lea.sflag [#allocation5], 1
    %918 = vsyncpa %s917, 1
    %919 = vsyncpa [#allocation8], 1
    %920 = vsyncpa [#allocation6], 1
    %s921 = scalar_lea.sflag [#allocation6], 1
    %922 = vsyncpa %s921, 1

</llo_original>
